<compile_context>
chip_gen: v5e
topology: v5e:2x2
jax: 0.10.0
libtpu: 0.0.40
codegen_flags: <defaults>
</compile_context>

<pallas_src>
import functools

import jax
import jax.numpy as jnp
from jax.experimental import pallas as pl
from jax.experimental.pallas import tpu as pltpu


def _pooling_kernel(x_ref, o_ref, *, pooling_type, inv_hw, use_mxu_sum):
    # x_ref: (TR, HW) rows of the flattened (N*C, H*W) input, lane-dense.
    # o_ref: (TR, 1)  pooled value per row.
    x = x_ref[...]  # native dtype; no full-block f32 widen is materialized
    sum_r = None
    max_r = None
    acc = None
    for method in pooling_type:
        if method == "GAP":
            if sum_r is None:
                if use_mxu_sum:
                    # Offload the lane reduction to the (otherwise idle) MXU;
                    # products are exact (x * 1) and accumulation is f32.
                    ones_col = jnp.ones((x.shape[1], 1), dtype=x.dtype)
                    s = jnp.dot(x, ones_col, preferred_element_type=jnp.float32)
                else:
                    # Widen fuses into the reduction (no (TR, HW) f32 temp).
                    s = jnp.sum(x, axis=-1, keepdims=True, dtype=jnp.float32)
                sum_r = s * inv_hw  # scalar mul on the tiny reduced result
            term = sum_r
        elif method == "GMP":
            if max_r is None:
                # max is exact in the native dtype; widen only the (TR, 1) result
                max_r = jnp.max(x, axis=-1, keepdims=True).astype(jnp.float32)
            term = max_r
        else:
            # unknown methods are silently skipped, matching the PyTorch __init__
            continue
        acc = term if acc is None else acc + term
    if acc is None:
        acc = jnp.zeros((x_ref.shape[0], 1), dtype=jnp.float32)
    o_ref[...] = acc.astype(o_ref.dtype)


def _tpu_vmem_capacity_bytes():
    try:
        return int(pltpu.get_tpu_info().vmem_capacity_bytes)
    except Exception:
        return 64 * 1024 * 1024  # conservative (v7x-sized) fallback


def _make_in_spec(tr, hw, deep):
    idx = lambda i: (i, 0)
    if deep:
        try:
            # 3-deep pipelining keeps the HBM stream saturated for small blocks.
            return pl.BlockSpec((tr, hw), idx, pipeline_mode=pl.Buffered(3)), 3
        except TypeError:
            pass  # older pl.BlockSpec without pipeline_mode: fall back to default
    return pl.BlockSpec((tr, hw), idx), 2


def pooling_forward(x, pooling_type=("GAP",), *, target_block_bytes=None):
    """Pallas equivalent of Pooling(pooling_type).forward(x).

    x: (N, C, H, W) array with H == W (the module's intended global-pooling use).
    returns: (N, C) array, sum of the selected global poolings.
    """
    N, C, H, W = x.shape
    # TODO(synk): F.avg/max_pool2d(kernel_size=H) on rectangular inputs (W != H)
    # yields multiple windows and an (N, C*windows) flattened output; only the
    # square-input global-pooling case is implemented.
    assert H == W, "pooling_forward only implements the square-input (H == W) case"

    HW = H * W
    NC = N * C
    x2 = x.reshape(NC, HW)  # free reshape for contiguous NCHW

    itemsize = jnp.dtype(x.dtype).itemsize
    # Padded-byte budgeting: lanes round up to 128, rows sublane-pack per dtype.
    lanes_padded = pl.cdiv(HW, 128) * 128
    row_bytes = lanes_padded * itemsize
    sublane = {1: 32, 2: 16, 4: 8}.get(itemsize, 8)

    # Generation-aware defaults: bigger blocks / higher scoped VMEM on the
    # 128 MiB parts (v5e/v6e), conservative on 64 MiB-VMEM v7x.
    vmem_cap = _tpu_vmem_capacity_bytes()
    if vmem_cap >= 96 * 1024 * 1024:
        default_block, base_limit = 16 * 1024 * 1024, 80 * 1024 * 1024
    else:
        default_block, base_limit = 8 * 1024 * 1024, 40 * 1024 * 1024
    if target_block_bytes is None:
        target_block_bytes = default_block

    tr = max(1, int(target_block_bytes) // row_bytes)
    # Never collapse big inputs to a single grid step: keep >=4 programs so
    # both v7x TensorCores get work and double buffering overlaps DMA/compute.
    total_bytes = NC * row_bytes
    if total_bytes > 4 * 1024 * 1024:
        tr = min(tr, pl.cdiv(NC, 4))
    if tr >= NC:
        tr = NC  # single full-extent row block (tiny inputs)
    else:
        tr = max(sublane, (tr // sublane) * sublane)
    grid = (pl.cdiv(NC, tr),)

    block_bytes = tr * row_bytes
    deep = (block_bytes < 1 * 1024 * 1024) and (grid[0] >= 3)
    in_spec, n_buf = _make_in_spec(tr, HW, deep)

    vmem_limit = int(max(base_limit, n_buf * block_bytes + (4 << 20)))
    vmem_limit = min(vmem_limit, max(base_limit, vmem_cap - (8 << 20)))

    use_mxu_sum = bool(
        jnp.issubdtype(x.dtype, jnp.floating) and (HW % 128 == 0) and HW >= 128
    )

    kernel = functools.partial(
        _pooling_kernel,
        pooling_type=tuple(pooling_type),
        inv_hw=1.0 / float(HW),
        use_mxu_sum=use_mxu_sum,
    )

    out_flat = pl.pallas_call(
        kernel,
        out_shape=jax.ShapeDtypeStruct((NC, 1), x.dtype),
        grid=grid,
        in_specs=[in_spec],
        out_specs=pl.BlockSpec((tr, 1), lambda i: (i, 0)),
        compiler_params=pltpu.CompilerParams(
            dimension_semantics=("parallel",),
            vmem_limit_bytes=vmem_limit,
        ),
    )(x2)
    return out_flat.reshape(N, C)


def _reference(x, pooling_type=("GAP",)):
    xf = x.astype(jnp.float32)
    outs = []
    for method in pooling_type:
        if method == "GAP":
            outs.append(jnp.mean(xf, axis=(2, 3)))
        elif method == "GMP":
            outs.append(jnp.max(xf, axis=(2, 3)))
    return sum(outs)


if __name__ == "__main__":
    key = jax.random.PRNGKey(0)
    # small NCHW input consistent with the module: batch=2, channels=4, 16x16
    x = jax.random.normal(key, (2, 4, 16, 16), dtype=jnp.float32)

    # default configuration: pooling_type=['GAP']
    out_gap = pooling_forward(x, pooling_type=("GAP",))
    jax.block_until_ready(out_gap)
    assert out_gap.shape == (2, 4)
    assert jnp.allclose(out_gap, _reference(x, ("GAP",)), atol=1e-5, rtol=1e-5)

    # GAP+GMP configuration (single-pass dual reduction in the kernel)
    out_both = pooling_forward(x, pooling_type=("GAP", "GMP"))
    jax.block_until_ready(out_both)
    assert out_both.shape == (2, 4)
    assert jnp.allclose(out_both, _reference(x, ("GAP", "GMP")), atol=1e-5, rtol=1e-5)

    # multi-block grid path: several row tiles, a partial edge block, and the
    # deeper (Buffered(3)) pipeline for small per-step blocks
    key2 = jax.random.PRNGKey(1)
    x2 = jax.random.normal(key2, (3, 40, 16, 16), dtype=jnp.float32)  # N*C = 120
    out_tiled = pooling_forward(
        x2, pooling_type=("GAP", "GMP"), target_block_bytes=32 * 1024
    )
    jax.block_until_ready(out_tiled)
    assert out_tiled.shape == (3, 40)
    assert jnp.allclose(out_tiled, _reference(x2, ("GAP", "GMP")), atol=1e-5, rtol=1e-5)

    # bf16 path: native-dtype max + f32-accumulated sum (no f32 block widen)
    x_bf16 = jax.random.normal(key, (2, 4, 16, 16), dtype=jnp.bfloat16)
    out_bf16 = pooling_forward(x_bf16, pooling_type=("GAP", "GMP"))
    jax.block_until_ready(out_bf16)
    assert out_bf16.shape == (2, 4)
    assert jnp.allclose(
        out_bf16.astype(jnp.float32),
        _reference(x_bf16, ("GAP", "GMP")),
        atol=5e-2,
        rtol=5e-2,
    )

    print("KERNEL_OK")
</pallas_src>

<mosaic_0001>
module attributes {stable_mosaic.version = 11 : i64} {
  func.func @_pooling_kernel(%arg0: i32, %arg1: memref<8x256xf32, #tpu.memory_space<vmem>>, %arg2: memref<8x1xf32, #tpu.memory_space<vmem>>) attributes {dimension_semantics = [#tpu.dimension_semantics<parallel>], iteration_bounds = array<i64: 1>, scalar_prefetch = 0 : i64, scratch_operands = 0 : i64, tpu.core_type = #tpu.core_type<tc>, window_params = [{transform_indices = @transform_0, window_bounds = array<i64: 8, 256>}, {transform_indices = @transform_1, window_bounds = array<i64: 8, 1>}]} {
    %c0 = arith.constant 0 : index
    %c0_0 = arith.constant 0 : index
    %0 = vector.load %arg1[%c0, %c0_0] : memref<8x256xf32, #tpu.memory_space<vmem>>, vector<8x256xf32>
    %cst = arith.constant 1.000000e+00 : f32
    %1 = vector.broadcast %cst : f32 to vector<256x1xf32>
    %cst_1 = arith.constant dense<0.000000e+00> : vector<8x1xf32>
    %2 = tpu.matmul %0, %1, %cst_1 {dimension_numbers = #tpu.dot_dimension_numbers<[1], [0], [0], [1], [0, 0, 1, 1], [], []>} : vector<8x256xf32>, vector<256x1xf32>, vector<8x1xf32> -> vector<8x1xf32>
    %cst_2 = arith.constant 3.906250e-03 : f32
    %3 = vector.broadcast %cst_2 : f32 to vector<8x1xf32>
    %4 = arith.mulf %2, %3 : vector<8x1xf32>
    %c0_3 = arith.constant 0 : index
    %c0_4 = arith.constant 0 : index
    %5 = vector.load %arg2[%c0_3, %c0_4] : memref<8x1xf32, #tpu.memory_space<vmem>>, vector<8x1xf32>
    tpu.vector_store %arg2[%c0_3, %c0_4], %4 {strides = array<i32>} : memref<8x1xf32, #tpu.memory_space<vmem>>, vector<8x1xf32>,
    return
  }
  func.func @transform_0(%arg0: i32) -> (i32, i32) {
    %c0_i32 = arith.constant 0 : i32
    %c0_i32_0 = arith.constant 0 : i32
    return %arg0, %c0_i32 : i32, i32
  }
  func.func @transform_1(%arg0: i32) -> (i32, i32) {
    %c0_i32 = arith.constant 0 : i32
    %c0_i32_0 = arith.constant 0 : i32
    return %arg0, %c0_i32 : i32, i32
  }
}

</mosaic_0001>

<llo_original>
// kernel: tpu_custom_call.1
$region0: #{tpu_custom_call.1}
  #allocation0 [shape = 'u32[]', space=smem, size = 0x4, offset = 0x4, fixed_abs, tag = 'smem constant byte address 0x4 - core index']
  #allocation1 [shape = 'u32[72,128]{1,0:T(1,128)}', space=vmem, size = 0x9000, scoped, tag = 'internal scratch']
  %s0 = inlined_call_operand.hbm [shape: f32[8,256], index: 0, kind: input, shape index: {}]
  %s1 = inlined_call_operand.vmem [shape: f32[8,1], index: 1, kind: output, shape index: {}]
  %s2 = sld [smem:[#allocation0]]
  $region18: #{tpu_custom_call.1} parent=0
    _
  %s4 = ssub.s32 1, %s2
  %s5 = scalar_select 0, %s4, %s2
  $region1: #{tpu_custom_call.1} parent=0
    #allocation2 [shape = 'u8[8192]{0}', space=vmem, size = 0x2000, scoped, tag = 'input window, operand 0, single buffered']
    #allocation3 [shape = 's32[1]{0}', space=sflag, size = 0x4, scoped, tag = 'scoped memory for tpu_custom_call.1']
    %6 = vsyncpa [#allocation3], 0
    // Predicated region
    $region2: #{tpu_custom_call.1} parent=1 // pred_check
      _
    $region3: #{tpu_custom_call.1} parent=1 // pred_check_branch
      %8 = sbr.rel (0) target = $region5
    $region4: #{tpu_custom_call.1} parent=1 // pred_region
      %10 = vsyncadd [#allocation3], 0
      %s12 = sshll.u32 %s0, 4
      %s13 = int_to_ptr.hbm [resolvable:$true] %s12
      %s14 = sshll.u32 [#allocation2], 4
      %s15 = int_to_ptr.vmem [resolvable:$true] %s14
      %17 = dma.hbm_to_vmem [thread:$0]  %s13, 256, %s15, [#allocation3]
    $region5: #{tpu_custom_call.1} parent=1 // pred_fallthru
      _
    // Predicated region
    $region6: #{tpu_custom_call.1} parent=1 // pred_check
      _
    $region7: #{tpu_custom_call.1} parent=1 // pred_check_branch
      %19 = sbr.rel (0) target = $region9
    $region8: #{tpu_custom_call.1} parent=1 // pred_region
      %21 = dma.done [#allocation3], 256
    $region9: #{tpu_custom_call.1} parent=1 // pred_fallthru
      _
    %v22 = vld [vmem:[#allocation2] sm:$0xff]
    %v23 = vld [vmem:[#allocation2 + $0x8] sm:$0xff]
    %24 = vmatpush.msra.mxu0 1.0
    %25 = vmatpush.msra.mxu0 1.0
    %26 = vmatpush.msra.mxu0 1.0
    %27 = vmatpush.msra.mxu0 1.0
    %28 = vmatpush.msra.mxu0 1.0
    %29 = vmatpush.msra.mxu0 1.0
    %30 = vmatpush.msra.mxu0 1.0
    %31 = vmatpush.msra.mxu0 1.0
    %32 = vmatpush.msra.mxu0 1.0
    %33 = vmatpush.msra.mxu0 1.0
    %34 = vmatpush.msra.mxu0 1.0
    %35 = vmatpush.msra.mxu0 1.0
    %36 = vmatpush.msra.mxu0 1.0
    %37 = vmatpush.msra.mxu0 1.0
    %38 = vmatpush.msra.mxu0 1.0
    %39 = vmatpush.msra.mxu0 1.0
    %40 = vmatmul.f32.gmra.mxu0 %v22
    %v41 = vpop.f32.mrf.mxu0
    %v42 = vadd.f32 0.0, %v41
    %43 = vdwg.mxu0
    %44 = vmatpush.msra.mxu0 1.0
    %45 = vmatpush.msra.mxu0 1.0
    %46 = vmatpush.msra.mxu0 1.0
    %47 = vmatpush.msra.mxu0 1.0
    %48 = vmatpush.msra.mxu0 1.0
    %49 = vmatpush.msra.mxu0 1.0
    %50 = vmatpush.msra.mxu0 1.0
    %51 = vmatpush.msra.mxu0 1.0
    %52 = vmatpush.msra.mxu0 1.0
    %53 = vmatpush.msra.mxu0 1.0
    %54 = vmatpush.msra.mxu0 1.0
    %55 = vmatpush.msra.mxu0 1.0
    %56 = vmatpush.msra.mxu0 1.0
    %57 = vmatpush.msra.mxu0 1.0
    %58 = vmatpush.msra.mxu0 1.0
    %59 = vmatpush.msra.mxu0 1.0
    %60 = vmatmul.f32.gmra.mxu0 %v23
    %v61 = vpop.f32.mrf.mxu0
    %v62 = vadd.f32 %v42, %v61
    %63 = vdwg.mxu0
    %v64 = vmul.f32 %v62, 0.00390625
    %vm65 = vcmask 7168
    %66 = vst.msk [vmem:[%s1] sm:$0xff] %vm65, %v64
    // Predicated region
    $region10: #{tpu_custom_call.1} parent=1 // pred_check
      _
    $region11: #{tpu_custom_call.1} parent=1 // pred_check_branch
      %68 = sbr.rel (0) target = $region13
    $region12: #{tpu_custom_call.1} parent=1 // pred_region
      _
    $region13: #{tpu_custom_call.1} parent=1 // pred_fallthru
      _
    // Predicated region
    $region14: #{tpu_custom_call.1} parent=1 // pred_check
      _
    $region15: #{tpu_custom_call.1} parent=1 // pred_check_branch
      %70 = sbr.rel (0) target = $region17
    $region16: #{tpu_custom_call.1} parent=1 // pred_region
      _
    $region17: #{tpu_custom_call.1} parent=1 // pred_fallthru
      _
    %71 = vsyncpa [#allocation3], 1

</llo_original>
